<compile_context>
chip_gen: v7x
topology: tpu7x:2x2x1
jax: 0.10.0
libtpu: 0.0.40
codegen_flags: <defaults>
</compile_context>

<pallas_src>
import jax
import jax.numpy as jnp
from jax.experimental import pallas as pl
from jax.experimental.pallas import tpu as pltpu


def _round_up(v, m):
    return ((v + m - 1) // m) * m


def _generator_kernel(x_ref,
                      w1_ref, b1_ref,
                      w2_ref, b2_ref,
                      w3_ref, b3_ref,
                      w4_ref, b4_ref,
                      o_ref):
    """Fused 4-layer MLP forward for one (TB, LATENT_DIM) batch tile."""
    compute_dtype = w1_ref.dtype  # bf16 weights -> bf16 MXU operands

    def leaky_relu(h):
        # LeakyReLU with negative_slope = 0.2 (f32 on the VPU)
        return jnp.where(h >= 0.0, h, 0.2 * h)

    x = x_ref[...].astype(compute_dtype)

    # fc1 + LeakyReLU  (Dropout(0.3) = identity in eval mode)
    h = jnp.dot(x, w1_ref[...], preferred_element_type=jnp.float32) + b1_ref[...]
    h = leaky_relu(h)

    # fc2 + LeakyReLU
    h = jnp.dot(h.astype(compute_dtype), w2_ref[...],
                preferred_element_type=jnp.float32) + b2_ref[...]
    h = leaky_relu(h)

    # fc3 + LeakyReLU
    h = jnp.dot(h.astype(compute_dtype), w3_ref[...],
                preferred_element_type=jnp.float32) + b3_ref[...]
    h = leaky_relu(h)

    # fc4 + Tanh
    h = jnp.dot(h.astype(compute_dtype), w4_ref[...],
                preferred_element_type=jnp.float32) + b4_ref[...]
    o_ref[...] = jnp.tanh(h).astype(o_ref.dtype)


def generator_forward(x, params, *, block_b=1024, out_dtype=jnp.float32):
    """x: (B, LATENT_DIM) f32; params: dict of (in,out) bf16 weights + (1,out) f32 biases.

    out_dtype=jnp.bfloat16 halves output HBM writeback if downstream tolerates it.
    """
    B, latent = x.shape

    # --- fc4 output dim: keep output stores lane-dense (multiple of 128). ---
    w4, b4 = params["w4"], params["b4"]
    hw = w4.shape[1]
    hw_pad = _round_up(hw, 128)
    if hw_pad != hw:
        w4 = jnp.pad(w4, ((0, 0), (0, hw_pad - hw)))
        b4 = jnp.pad(b4, ((0, 0), (0, hw_pad - hw)))

    # --- Batch tile selection (no input padding / output slicing needed):
    # Pallas masks boundary blocks, so grid = cdiv(B, tb) handles ragged B.
    # Multiple of 16 rows (bf16 sublane packing); 256 rows when multi-step
    # (MXU M-fill on v6e/v7x).  For v7x megacore, prefer a block_b that yields
    # an even number of grid steps at your production batch size.
    align = 256 if block_b >= 256 else 16
    tb = min(_round_up(block_b, align), _round_up(B, 16))
    tb = max(tb, 16)
    grid = (pl.cdiv(B, tb),)

    def resident(arr):
        # Full-array block whose index never changes -> stays resident in VMEM.
        return pl.BlockSpec(arr.shape, lambda i: (0, 0))

    in_specs = [
        pl.BlockSpec((tb, latent), lambda i: (i, 0)),      # x tile (streamed)
        resident(params["w1"]), resident(params["b1"]),
        resident(params["w2"]), resident(params["b2"]),
        resident(params["w3"]), resident(params["b3"]),
        resident(w4), resident(b4),
    ]
    out_spec = pl.BlockSpec((tb, hw_pad), lambda i: (i, 0))  # out tile (streamed)

    dims = [latent, 128, 256, 512, hw_pad]
    flops = 2 * B * sum(dims[i] * dims[i + 1] for i in range(4))
    param_bytes = sum(int(v.size) * v.dtype.itemsize for v in params.values())
    bytes_accessed = int(x.size * x.dtype.itemsize + param_bytes
                         + B * hw_pad * jnp.dtype(out_dtype).itemsize)
    cost = pl.CostEstimate(flops=int(flops),
                           transcendentals=int(B * hw_pad),
                           bytes_accessed=bytes_accessed)

    out = pl.pallas_call(
        _generator_kernel,
        out_shape=jax.ShapeDtypeStruct((B, hw_pad), out_dtype),
        grid=grid,
        in_specs=in_specs,
        out_specs=out_spec,
        compiler_params=pltpu.CompilerParams(
            dimension_semantics=("parallel",),
            # Big batch tiles: stay above v5e's 16 MiB scoped default while
            # leaving headroom under v7x's 64 MiB physical VMEM.
            vmem_limit_bytes=48 * 1024 * 1024),
        cost_estimate=cost,
    )(x,
      params["w1"], params["b1"],
      params["w2"], params["b2"],
      params["w3"], params["b3"],
      w4, b4)

    return out if hw_pad == hw else out[:, :hw]


def init_params(key, latent_dim, H, W):
    """Deterministic synthetic parameters (same shapes as the PyTorch module).

    Weights are bf16 (MXU-native); biases stay f32 (added after f32 accumulation).
    """
    dims = [latent_dim, 128, 256, 512, H * W]
    params = {}
    keys = jax.random.split(key, 8)
    for i in range(4):
        fan_in, fan_out = dims[i], dims[i + 1]
        bound = 1.0 / jnp.sqrt(fan_in)
        w = jax.random.uniform(keys[2 * i], (fan_in, fan_out), jnp.float32, -bound, bound)
        b = jax.random.uniform(keys[2 * i + 1], (1, fan_out), jnp.float32, -bound, bound)
        params[f"w{i+1}"] = w.astype(jnp.bfloat16)
        params[f"b{i+1}"] = b
    return params


def _reference_forward(x, params):
    """Pure-JAX reference mirroring the kernel's bf16-operand / f32-accumulate math."""
    cd = params["w1"].dtype
    h = x
    for i in range(1, 4):
        h = jnp.dot(h.astype(cd), params[f"w{i}"],
                    preferred_element_type=jnp.float32) + params[f"b{i}"]
        h = jnp.where(h >= 0.0, h, 0.2 * h)
    h = jnp.dot(h.astype(cd), params["w4"],
                preferred_element_type=jnp.float32) + params["b4"]
    return jnp.tanh(h)


if __name__ == "__main__":
    LATENT_DIM, H, W = 32, 16, 16

    key = jax.random.PRNGKey(0)
    k_params, k_x1, k_x2 = jax.random.split(key, 3)
    params = init_params(k_params, LATENT_DIM, H, W)

    # Test 1: small batch -> single grid step, masked tail rows (8 -> tile of 16).
    B1 = 8
    x1 = jax.random.normal(k_x1, (B1, LATENT_DIM), jnp.float32)
    out1 = jax.block_until_ready(generator_forward(x1, params))
    ref1 = _reference_forward(x1, params)
    assert out1.shape == (B1, H * W), out1.shape
    assert jnp.allclose(out1, ref1, atol=1e-4, rtol=1e-4), "mismatch vs reference (B=8)"

    # Test 2: batch not divisible by tile -> grid>1 + masked boundary block, no padding copies.
    B2 = 20
    x2 = jax.random.normal(k_x2, (B2, LATENT_DIM), jnp.float32)
    out2 = jax.block_until_ready(generator_forward(x2, params, block_b=16))
    ref2 = _reference_forward(x2, params)
    assert out2.shape == (B2, H * W), out2.shape
    assert jnp.allclose(out2, ref2, atol=1e-4, rtol=1e-4), "mismatch vs reference (B=20)"

    print("KERNEL_OK")
</pallas_src>

<mosaic_0001>
module attributes {stable_mosaic.version = 11 : i64} {
  func.func @_generator_kernel(%arg0: i32, %arg1: memref<16x32xf32, #tpu.memory_space<vmem>>, %arg2: memref<32x128xbf16, #tpu.memory_space<vmem>>, %arg3: memref<1x128xf32, #tpu.memory_space<vmem>>, %arg4: memref<128x256xbf16, #tpu.memory_space<vmem>>, %arg5: memref<1x256xf32, #tpu.memory_space<vmem>>, %arg6: memref<256x512xbf16, #tpu.memory_space<vmem>>, %arg7: memref<1x512xf32, #tpu.memory_space<vmem>>, %arg8: memref<512x256xbf16, #tpu.memory_space<vmem>>, %arg9: memref<1x256xf32, #tpu.memory_space<vmem>>, %arg10: memref<16x256xf32, #tpu.memory_space<vmem>>) attributes {dimension_semantics = [#tpu.dimension_semantics<parallel>], iteration_bounds = array<i64: 1>, scalar_prefetch = 0 : i64, scratch_operands = 0 : i64, tpu.core_type = #tpu.core_type<tc>, window_params = [{transform_indices = @transform_0, window_bounds = array<i64: 16, 32>}, {pipeline_mode = #tpu.pipeline_mode<synchronous>, transform_indices = @transform_1, window_bounds = array<i64: 32, 128>}, {pipeline_mode = #tpu.pipeline_mode<synchronous>, transform_indices = @transform_2, window_bounds = array<i64: 1, 128>}, {pipeline_mode = #tpu.pipeline_mode<synchronous>, transform_indices = @transform_3, window_bounds = array<i64: 128, 256>}, {pipeline_mode = #tpu.pipeline_mode<synchronous>, transform_indices = @transform_4, window_bounds = array<i64: 1, 256>}, {pipeline_mode = #tpu.pipeline_mode<synchronous>, transform_indices = @transform_5, window_bounds = array<i64: 256, 512>}, {pipeline_mode = #tpu.pipeline_mode<synchronous>, transform_indices = @transform_6, window_bounds = array<i64: 1, 512>}, {pipeline_mode = #tpu.pipeline_mode<synchronous>, transform_indices = @transform_7, window_bounds = array<i64: 512, 256>}, {pipeline_mode = #tpu.pipeline_mode<synchronous>, transform_indices = @transform_8, window_bounds = array<i64: 1, 256>}, {transform_indices = @transform_9, window_bounds = array<i64: 16, 256>}]} {
    %c0 = arith.constant 0 : index
    %c0_0 = arith.constant 0 : index
    %0 = vector.load %arg1[%c0, %c0_0] : memref<16x32xf32, #tpu.memory_space<vmem>>, vector<16x32xf32>
    %1 = arith.truncf %0 : vector<16x32xf32> to vector<16x32xbf16>
    %c0_1 = arith.constant 0 : index
    %c0_2 = arith.constant 0 : index
    %2 = vector.load %arg2[%c0_1, %c0_2] : memref<32x128xbf16, #tpu.memory_space<vmem>>, vector<32x128xbf16>
    %cst = arith.constant dense<0.000000e+00> : vector<16x128xf32>
    %3 = tpu.matmul %1, %2, %cst {dimension_numbers = #tpu.dot_dimension_numbers<[1], [0], [0], [1], [0, 0, 1, 1], [], []>} : vector<16x32xbf16>, vector<32x128xbf16>, vector<16x128xf32> -> vector<16x128xf32>
    %c0_3 = arith.constant 0 : index
    %c0_4 = arith.constant 0 : index
    %4 = vector.load %arg3[%c0_3, %c0_4] : memref<1x128xf32, #tpu.memory_space<vmem>>, vector<1x128xf32>
    %5 = vector.broadcast %4 : vector<1x128xf32> to vector<16x128xf32>
    %6 = arith.addf %3, %5 : vector<16x128xf32>
    %cst_5 = arith.constant 0.000000e+00 : f32
    %7 = vector.broadcast %cst_5 : f32 to vector<16x128xf32>
    %8 = arith.cmpf oge, %6, %7 : vector<16x128xf32>
    %cst_6 = arith.constant 2.000000e-01 : f32
    %9 = vector.broadcast %cst_6 : f32 to vector<16x128xf32>
    %10 = arith.mulf %9, %6 : vector<16x128xf32>
    %11 = arith.select %8, %6, %10 : vector<16x128xi1>, vector<16x128xf32>
    %12 = arith.truncf %11 : vector<16x128xf32> to vector<16x128xbf16>
    %c0_7 = arith.constant 0 : index
    %c0_8 = arith.constant 0 : index
    %13 = vector.load %arg4[%c0_7, %c0_8] : memref<128x256xbf16, #tpu.memory_space<vmem>>, vector<128x256xbf16>
    %cst_9 = arith.constant dense<0.000000e+00> : vector<16x256xf32>
    %14 = tpu.matmul %12, %13, %cst_9 {dimension_numbers = #tpu.dot_dimension_numbers<[1], [0], [0], [1], [0, 0, 1, 1], [], []>} : vector<16x128xbf16>, vector<128x256xbf16>, vector<16x256xf32> -> vector<16x256xf32>
    %c0_10 = arith.constant 0 : index
    %c0_11 = arith.constant 0 : index
    %15 = vector.load %arg5[%c0_10, %c0_11] : memref<1x256xf32, #tpu.memory_space<vmem>>, vector<1x256xf32>
    %16 = vector.broadcast %15 : vector<1x256xf32> to vector<16x256xf32>
    %17 = arith.addf %14, %16 : vector<16x256xf32>
    %cst_12 = arith.constant 0.000000e+00 : f32
    %18 = vector.broadcast %cst_12 : f32 to vector<16x256xf32>
    %19 = arith.cmpf oge, %17, %18 : vector<16x256xf32>
    %cst_13 = arith.constant 2.000000e-01 : f32
    %20 = vector.broadcast %cst_13 : f32 to vector<16x256xf32>
    %21 = arith.mulf %20, %17 : vector<16x256xf32>
    %22 = arith.select %19, %17, %21 : vector<16x256xi1>, vector<16x256xf32>
    %23 = arith.truncf %22 : vector<16x256xf32> to vector<16x256xbf16>
    %c0_14 = arith.constant 0 : index
    %c0_15 = arith.constant 0 : index
    %24 = vector.load %arg6[%c0_14, %c0_15] : memref<256x512xbf16, #tpu.memory_space<vmem>>, vector<256x512xbf16>
    %cst_16 = arith.constant dense<0.000000e+00> : vector<16x512xf32>
    %25 = tpu.matmul %23, %24, %cst_16 {dimension_numbers = #tpu.dot_dimension_numbers<[1], [0], [0], [1], [0, 0, 1, 1], [], []>} : vector<16x256xbf16>, vector<256x512xbf16>, vector<16x512xf32> -> vector<16x512xf32>
    %c0_17 = arith.constant 0 : index
    %c0_18 = arith.constant 0 : index
    %26 = vector.load %arg7[%c0_17, %c0_18] : memref<1x512xf32, #tpu.memory_space<vmem>>, vector<1x512xf32>
    %27 = vector.broadcast %26 : vector<1x512xf32> to vector<16x512xf32>
    %28 = arith.addf %25, %27 : vector<16x512xf32>
    %cst_19 = arith.constant 0.000000e+00 : f32
    %29 = vector.broadcast %cst_19 : f32 to vector<16x512xf32>
    %30 = arith.cmpf oge, %28, %29 : vector<16x512xf32>
    %cst_20 = arith.constant 2.000000e-01 : f32
    %31 = vector.broadcast %cst_20 : f32 to vector<16x512xf32>
    %32 = arith.mulf %31, %28 : vector<16x512xf32>
    %33 = arith.select %30, %28, %32 : vector<16x512xi1>, vector<16x512xf32>
    %34 = arith.truncf %33 : vector<16x512xf32> to vector<16x512xbf16>
    %c0_21 = arith.constant 0 : index
    %c0_22 = arith.constant 0 : index
    %35 = vector.load %arg8[%c0_21, %c0_22] : memref<512x256xbf16, #tpu.memory_space<vmem>>, vector<512x256xbf16>
    %cst_23 = arith.constant dense<0.000000e+00> : vector<16x256xf32>
    %36 = tpu.matmul %34, %35, %cst_23 {dimension_numbers = #tpu.dot_dimension_numbers<[1], [0], [0], [1], [0, 0, 1, 1], [], []>} : vector<16x512xbf16>, vector<512x256xbf16>, vector<16x256xf32> -> vector<16x256xf32>
    %c0_24 = arith.constant 0 : index
    %c0_25 = arith.constant 0 : index
    %37 = vector.load %arg9[%c0_24, %c0_25] : memref<1x256xf32, #tpu.memory_space<vmem>>, vector<1x256xf32>
    %38 = vector.broadcast %37 : vector<1x256xf32> to vector<16x256xf32>
    %39 = arith.addf %36, %38 : vector<16x256xf32>
    %40 = math.tanh %39 : vector<16x256xf32>
    %c0_26 = arith.constant 0 : index
    %c0_27 = arith.constant 0 : index
    %41 = vector.load %arg10[%c0_26, %c0_27] : memref<16x256xf32, #tpu.memory_space<vmem>>, vector<16x256xf32>
    tpu.vector_store %arg10[%c0_26, %c0_27], %40 {strides = array<i32>} : memref<16x256xf32, #tpu.memory_space<vmem>>, vector<16x256xf32>,
    return
  }
  func.func @transform_0(%arg0: i32) -> (i32, i32) {
    %c0_i32 = arith.constant 0 : i32
    %c0_i32_0 = arith.constant 0 : i32
    return %arg0, %c0_i32 : i32, i32
  }
  func.func @transform_1(%arg0: i32) -> (i32, i32) {
    %c0_i32 = arith.constant 0 : i32
    %c0_i32_0 = arith.constant 0 : i32
    %c0_i32_1 = arith.constant 0 : i32
    return %c0_i32, %c0_i32_0 : i32, i32
  }
  func.func @transform_2(%arg0: i32) -> (i32, i32) {
    %c0_i32 = arith.constant 0 : i32
    %c0_i32_0 = arith.constant 0 : i32
    %c0_i32_1 = arith.constant 0 : i32
    return %c0_i32, %c0_i32_0 : i32, i32
  }
  func.func @transform_3(%arg0: i32) -> (i32, i32) {
    %c0_i32 = arith.constant 0 : i32
    %c0_i32_0 = arith.constant 0 : i32
    %c0_i32_1 = arith.constant 0 : i32
    return %c0_i32, %c0_i32_0 : i32, i32
  }
  func.func @transform_4(%arg0: i32) -> (i32, i32) {
    %c0_i32 = arith.constant 0 : i32
    %c0_i32_0 = arith.constant 0 : i32
    %c0_i32_1 = arith.constant 0 : i32
    return %c0_i32, %c0_i32_0 : i32, i32
  }
  func.func @transform_5(%arg0: i32) -> (i32, i32) {
    %c0_i32 = arith.constant 0 : i32
    %c0_i32_0 = arith.constant 0 : i32
    %c0_i32_1 = arith.constant 0 : i32
    return %c0_i32, %c0_i32_0 : i32, i32
  }
  func.func @transform_6(%arg0: i32) -> (i32, i32) {
    %c0_i32 = arith.constant 0 : i32
    %c0_i32_0 = arith.constant 0 : i32
    %c0_i32_1 = arith.constant 0 : i32
    return %c0_i32, %c0_i32_0 : i32, i32
  }
  func.func @transform_7(%arg0: i32) -> (i32, i32) {
    %c0_i32 = arith.constant 0 : i32
    %c0_i32_0 = arith.constant 0 : i32
    %c0_i32_1 = arith.constant 0 : i32
    return %c0_i32, %c0_i32_0 : i32, i32
  }
  func.func @transform_8(%arg0: i32) -> (i32, i32) {
    %c0_i32 = arith.constant 0 : i32
    %c0_i32_0 = arith.constant 0 : i32
    %c0_i32_1 = arith.constant 0 : i32
    return %c0_i32, %c0_i32_0 : i32, i32
  }
  func.func @transform_9(%arg0: i32) -> (i32, i32) {
    %c0_i32 = arith.constant 0 : i32
    %c0_i32_0 = arith.constant 0 : i32
    return %arg0, %c0_i32 : i32, i32
  }
}

</mosaic_0001>

<llo_original>
// kernel: tpu_custom_call.1
$region0: #{tpu_custom_call.1}
  #allocation0 [shape = 'u32[]', space=smem, size = 0x4, offset = 0x4, fixed_abs, tag = 'smem constant byte address 0x4 - core index']
  #allocation1 [shape = 'u32[144,128]{1,0:T(1,128)}', space=vmem, size = 0x12000, scoped, tag = 'internal scratch']
  %s0 = inlined_call_operand.hbm [shape: f32[8,32], index: 0, kind: input, shape index: {}]
  %s1 = inlined_call_operand.hbm [shape: bf16[32,128], index: 1, kind: input, shape index: {}]
  %s2 = inlined_call_operand.vmem [shape: f32[1,128], index: 2, kind: input, shape index: {}]
  %s3 = inlined_call_operand.hbm [shape: bf16[128,256], index: 3, kind: input, shape index: {}]
  %s4 = inlined_call_operand.vmem [shape: f32[1,256], index: 4, kind: input, shape index: {}]
  %s5 = inlined_call_operand.hbm [shape: bf16[256,512], index: 5, kind: input, shape index: {}]
  %s6 = inlined_call_operand.vmem [shape: f32[1,512], index: 6, kind: input, shape index: {}]
  %s7 = inlined_call_operand.hbm [shape: bf16[512,256], index: 7, kind: input, shape index: {}]
  %s8 = inlined_call_operand.vmem [shape: f32[1,256], index: 8, kind: input, shape index: {}]
  %s9 = inlined_call_operand.hbm [shape: f32[8,256], index: 9, kind: output, shape index: {}]
  %s10 = sld [smem:[#allocation0]]
  $region66: #{tpu_custom_call.1} parent=0
    _
  %s12 = ssub.s32 1, %s10
  %s13 = scalar_select 0, %s12, %s10
  $region1: #{tpu_custom_call.1} parent=0
    #allocation2 [shape = 'u8[8192]{0}', space=vmem, size = 0x2000, scoped, tag = 'input window, operand 0, single buffered']
    #allocation3 [shape = 's32[1]{0}', space=sflag, size = 0x4, scoped, tag = 'scoped memory for tpu_custom_call.1']
    #allocation4 [shape = 's32[1]{0}', space=sflag, size = 0x4, scoped, tag = 'scoped memory for tpu_custom_call.1']
    #allocation5 [shape = 'u8[8192]{0}', space=vmem, size = 0x2000, scoped, tag = 'input window, operand 1, single buffered']
    #allocation6 [shape = 's32[1]{0}', space=sflag, size = 0x4, scoped, tag = 'scoped memory for tpu_custom_call.1']
    #allocation7 [shape = 'u8[65536]{0}', space=vmem, size = 0x10000, scoped, tag = 'input window, operand 3, single buffered']
    #allocation8 [shape = 'u8[262144]{0}', space=vmem, size = 0x40000, scoped, tag = 'input window, operand 5, single buffered']
    #allocation9 [shape = 's32[1]{0}', space=sflag, size = 0x4, scoped, tag = 'scoped memory for tpu_custom_call.1']
    #allocation10 [shape = 'u8[262144]{0}', space=vmem, size = 0x40000, scoped, tag = 'input window, operand 7, single buffered']
    #allocation11 [shape = 'u8[16384]{0}', space=vmem, size = 0x4000, scoped, tag = 'output window, operand 0, single buffered']
    %14 = vsyncpa [#allocation3], 0
    %15 = vsyncpa [#allocation6], 0
    %16 = vsyncpa [#allocation9], 0
    %17 = vsyncpa [#allocation4], 0
    // Predicated region
    $region2: #{tpu_custom_call.1} parent=1 // pred_check
      _
    $region3: #{tpu_custom_call.1} parent=1 // pred_check_branch
      %19 = sbr.rel (0) target = $region5
    $region4: #{tpu_custom_call.1} parent=1 // pred_region
      %s21 = ssub.s32 256, 128
      %22 = vsyncadd [#allocation3], %s21
      %s23 = sshll.u32 [#allocation2], 4
      %s24 = int_to_ptr.vmem [resolvable:$true] %s23
      %29 = dma.hbm_to_vmem [thread:$0]  %s0, 128, %s24, [#allocation3], 128, 128, 8
    $region5: #{tpu_custom_call.1} parent=1 // pred_fallthru
      _
    // Predicated region
    $region6: #{tpu_custom_call.1} parent=1 // pred_check
      _
    $region7: #{tpu_custom_call.1} parent=1 // pred_check_branch
      %31 = sbr.rel (0) target = $region9
    $region8: #{tpu_custom_call.1} parent=1 // pred_region
      %s33 = ssub.s32 256, 256
      %34 = vsyncadd [#allocation6], %s33
      %s35 = sshll.u32 [#allocation5], 4
      %s36 = int_to_ptr.vmem [resolvable:$true] %s35
      %41 = dma.hbm_to_vmem [thread:$0]  %s1, 256, %s36, [#allocation6], 64, 64, 4
    $region9: #{tpu_custom_call.1} parent=1 // pred_fallthru
      _
    // Predicated region
    $region10: #{tpu_custom_call.1} parent=1 // pred_check
      _
    $region11: #{tpu_custom_call.1} parent=1 // pred_check_branch
      %43 = sbr.rel (0) target = $region13
    $region12: #{tpu_custom_call.1} parent=1 // pred_region
      _
    $region13: #{tpu_custom_call.1} parent=1 // pred_fallthru
      _
    // Predicated region
    $region14: #{tpu_custom_call.1} parent=1 // pred_check
      _
    $region15: #{tpu_custom_call.1} parent=1 // pred_check_branch
      %45 = sbr.rel (0) target = $region17
    $region16: #{tpu_custom_call.1} parent=1 // pred_region
      %s47 = ssub.s32 2048, 2048
      %48 = vsyncadd [#allocation6], %s47
      %s49 = sshll.u32 [#allocation7], 4
      %s50 = int_to_ptr.vmem [resolvable:$true] %s49
      %55 = dma.hbm_to_vmem [thread:$0]  %s3, 2048, %s50, [#allocation6], 128, 128, 8
    $region17: #{tpu_custom_call.1} parent=1 // pred_fallthru
      _
    // Predicated region
    $region18: #{tpu_custom_call.1} parent=1 // pred_check
      _
    $region19: #{tpu_custom_call.1} parent=1 // pred_check_branch
      %57 = sbr.rel (0) target = $region21
    $region20: #{tpu_custom_call.1} parent=1 // pred_region
      _
    $region21: #{tpu_custom_call.1} parent=1 // pred_fallthru
      _
    // Predicated region
    $region22: #{tpu_custom_call.1} parent=1 // pred_check
      _
    $region23: #{tpu_custom_call.1} parent=1 // pred_check_branch
      %59 = sbr.rel (0) target = $region25
    $region24: #{tpu_custom_call.1} parent=1 // pred_region
      %s61 = ssub.s32 8192, 8192
      %62 = vsyncadd [#allocation9], %s61
      %s63 = sshll.u32 [#allocation8], 4
      %s64 = int_to_ptr.vmem [resolvable:$true] %s63
      %69 = dma.hbm_to_vmem [thread:$0]  %s5, 8192, %s64, [#allocation9], 256, 256, 16
    $region25: #{tpu_custom_call.1} parent=1 // pred_fallthru
      _
    // Predicated region
    $region26: #{tpu_custom_call.1} parent=1 // pred_check
      _
    $region27: #{tpu_custom_call.1} parent=1 // pred_check_branch
      %71 = sbr.rel (0) target = $region29
    $region28: #{tpu_custom_call.1} parent=1 // pred_region
      _
    $region29: #{tpu_custom_call.1} parent=1 // pred_fallthru
      _
    // Predicated region
    $region30: #{tpu_custom_call.1} parent=1 // pred_check
      _
    $region31: #{tpu_custom_call.1} parent=1 // pred_check_branch
      %73 = sbr.rel (0) target = $region33
    $region32: #{tpu_custom_call.1} parent=1 // pred_region
      %s75 = ssub.s32 8192, 8192
      %76 = vsyncadd [#allocation9], %s75
      %s77 = sshll.u32 [#allocation10], 4
      %s78 = int_to_ptr.vmem [resolvable:$true] %s77
      %83 = dma.hbm_to_vmem [thread:$0]  %s7, 8192, %s78, [#allocation9], 128, 128, 8
    $region33: #{tpu_custom_call.1} parent=1 // pred_fallthru
      _
    // Predicated region
    $region34: #{tpu_custom_call.1} parent=1 // pred_check
      _
    $region35: #{tpu_custom_call.1} parent=1 // pred_check_branch
      %85 = sbr.rel (0) target = $region37
    $region36: #{tpu_custom_call.1} parent=1 // pred_region
      _
    $region37: #{tpu_custom_call.1} parent=1 // pred_fallthru
      _
    // Predicated region
    $region38: #{tpu_custom_call.1} parent=1 // pred_check
      _
    $region39: #{tpu_custom_call.1} parent=1 // pred_check_branch
      %87 = sbr.rel (0) target = $region41
    $region40: #{tpu_custom_call.1} parent=1 // pred_region
      %88 = dma.done [#allocation3], 256
    $region41: #{tpu_custom_call.1} parent=1 // pred_fallthru
      _
    // Predicated region
    $region42: #{tpu_custom_call.1} parent=1 // pred_check
      _
    $region43: #{tpu_custom_call.1} parent=1 // pred_check_branch
      %90 = sbr.rel (0) target = $region45
    $region44: #{tpu_custom_call.1} parent=1 // pred_region
      %91 = dma.done [#allocation6], 256
    $region45: #{tpu_custom_call.1} parent=1 // pred_fallthru
      _
    // Predicated region
    $region46: #{tpu_custom_call.1} parent=1 // pred_check
      _
    $region47: #{tpu_custom_call.1} parent=1 // pred_check_branch
      %93 = sbr.rel (0) target = $region49
    $region48: #{tpu_custom_call.1} parent=1 // pred_region
      %94 = dma.done [#allocation6], 2048
    $region49: #{tpu_custom_call.1} parent=1 // pred_fallthru
      _
    // Predicated region
    $region50: #{tpu_custom_call.1} parent=1 // pred_check
      _
    $region51: #{tpu_custom_call.1} parent=1 // pred_check_branch
      %96 = sbr.rel (0) target = $region53
    $region52: #{tpu_custom_call.1} parent=1 // pred_region
      %97 = dma.done [#allocation9], 8192
    $region53: #{tpu_custom_call.1} parent=1 // pred_fallthru
      _
    // Predicated region
    $region54: #{tpu_custom_call.1} parent=1 // pred_check
      _
    $region55: #{tpu_custom_call.1} parent=1 // pred_check_branch
      %99 = sbr.rel (0) target = $region57
    $region56: #{tpu_custom_call.1} parent=1 // pred_region
      %100 = dma.done [#allocation9], 8192
    $region57: #{tpu_custom_call.1} parent=1 // pred_fallthru
      _
    %v102 = vld [vmem:[#allocation2] sm:$0xff]
    %v103 = vld [vmem:[#allocation2 + $0x8] sm:$0xff]
    %v104 = vpack.c.bf16 %v103, %v102
    %v105 = vld [vmem:[#allocation5] sm:$0xf]
    %v106 = vld [vmem:[#allocation5 + $0x4] sm:$0xf]
    %v107 = vld [vmem:[#allocation5 + $0x8] sm:$0xf]
    %v108 = vld [vmem:[#allocation5 + $0xc] sm:$0xf]
    %v109 = vld [vmem:[%s2] sm:$0x1]
    %v111 = vlaneseq
    %v112 = vshrl.u32 %v111, 7
    %v113 = vsub.s32 0, %v112
    %v114 = vrot.slane %v109, %v113
    %v120 = vunpack.c.l.b16 %v105
    %v121 = vunpack.c.l.b16 %v106
    %v122 = vunpack.c.l.b16 %v107
    %v123 = vunpack.c.l.b16 %v108
    %v124 = vpack.c.b16 %v121, %v120
    %v125 = vpack.c.b16 %v123, %v122
    %vm128 = vcmask 261120
    %v130 = vsel %vm128, %v104, 0
    %132 = vmatprep.subr.bf16.mxu0 0
    %133 = vmatpush1.bf16.msra.mxu0 %v124
    %134 = vmatprep.subr.bf16.mxu0 0
    %135 = vmatpush1.bf16.msra.mxu0 %v125
    %136 = vmatprep.subr.bf16.mxu0 0
    %137 = vmatpush1.bf16.msra.mxu0 0
    %138 = vmatprep.subr.bf16.mxu0 0
    %139 = vmatpush1.bf16.msra.mxu0 0
    %140 = vmatprep.subr.bf16.mxu0 0
    %141 = vmatpush1.bf16.msra.mxu0 0
    %142 = vmatprep.subr.bf16.mxu0 0
    %143 = vmatpush1.bf16.msra.mxu0 0
    %144 = vmatprep.subr.bf16.mxu0 0
    %145 = vmatpush1.bf16.msra.mxu0 0
    %146 = vmatprep.subr.bf16.mxu0 0
    %147 = vmatpush1.bf16.msra.mxu0 0
    %148 = vmatprep.subr.bf16.mxu0 0
    %149 = vmatpush1.bf16.msra.mxu0 0
    %150 = vmatprep.subr.bf16.mxu0 0
    %151 = vmatpush1.bf16.msra.mxu0 0
    %152 = vmatprep.subr.bf16.mxu0 0
    %153 = vmatpush1.bf16.msra.mxu0 0
    %154 = vmatprep.subr.bf16.mxu0 0
    %155 = vmatpush1.bf16.msra.mxu0 0
    %156 = vmatprep.subr.bf16.mxu0 0
    %157 = vmatpush1.bf16.msra.mxu0 0
    %158 = vmatprep.subr.bf16.mxu0 0
    %159 = vmatpush1.bf16.msra.mxu0 0
    %160 = vmatprep.subr.bf16.mxu0 0
    %161 = vmatpush1.bf16.msra.mxu0 0
    %162 = vmatprep.subr.bf16.mxu0 0
    %163 = vmatpush1.bf16.msra.mxu0 0
    %164 = vmatprep.mubr.bf16.mxu0 0
    %165 = vmatmul.mubr.bf16.gmra.mrb[0].mxu0 %v130
    %v166 = vpop.f32.mrb[0].mxu0
    %v167 = vadd.f32 %v114, %v166
    %v168 = vpop.f32.mrb[0].mxu0
    %v169 = vpop.f32.mrb[0].mxu0
    %v170 = vadd.f32 %v114, %v169
    %v171 = vpop.f32.mrb[0].mxu0
    %172 = vdwg.mxu0
    %vm173 = vcmp.ge.f32.partialorder %v167, 0.0
    %vm174 = vcmp.ge.f32.partialorder %v170, 0.0
    %v175 = vmul.f32 %v167, 0.2
    %v176 = vmul.f32 %v170, 0.2
    %v177 = vsel %vm173, %v167, %v175
    %v178 = vsel %vm174, %v170, %v176
    %v179 = vpack.c.bf16 %v178, %v177
    %v180 = vld [vmem:[#allocation7] sm:$0xff]
    %v181 = vld [vmem:[#allocation7 + $0x8] sm:$0xff]
    %v182 = vld [vmem:[#allocation7 + $0x10] sm:$0xff]
    %v183 = vld [vmem:[#allocation7 + $0x18] sm:$0xff]
    %v184 = vld [vmem:[#allocation7 + $0x20] sm:$0xff]
    %v185 = vld [vmem:[#allocation7 + $0x28] sm:$0xff]
    %v186 = vld [vmem:[#allocation7 + $0x30] sm:$0xff]
    %v187 = vld [vmem:[#allocation7 + $0x38] sm:$0xff]
    %v188 = vld [vmem:[#allocation7 + $0x40] sm:$0xff]
    %v189 = vld [vmem:[#allocation7 + $0x48] sm:$0xff]
    %v190 = vld [vmem:[#allocation7 + $0x50] sm:$0xff]
    %v191 = vld [vmem:[#allocation7 + $0x58] sm:$0xff]
    %v192 = vld [vmem:[#allocation7 + $0x60] sm:$0xff]
    %v193 = vld [vmem:[#allocation7 + $0x68] sm:$0xff]
    %v194 = vld [vmem:[#allocation7 + $0x70] sm:$0xff]
    %v195 = vld [vmem:[#allocation7 + $0x78] sm:$0xff]
    %v196 = vld [vmem:[%s4] sm:$0x3]
    %v198 = vlaneseq
    %v199 = vshrl.u32 %v198, 7
    %v200 = vsub.s32 0, %v199
    %v201 = vrot.slane %v196, %v200
    %v202 = vlaneseq
    %v203 = vshrl.u32 %v202, 7
    %v204 = vsub.s32 1, %v203
    %v205 = vrot.slane %v196, %v204
    %v224 = vunpack.c.l.b16 %v180
    %v225 = vunpack.c.h.b16 %v180
    %v226 = vunpack.c.l.b16 %v181
    %v227 = vunpack.c.h.b16 %v181
    %v228 = vunpack.c.l.b16 %v182
    %v229 = vunpack.c.h.b16 %v182
    %v230 = vunpack.c.l.b16 %v183
    %v231 = vunpack.c.h.b16 %v183
    %v232 = vunpack.c.l.b16 %v184
    %v233 = vunpack.c.h.b16 %v184
    %v234 = vunpack.c.l.b16 %v185
    %v235 = vunpack.c.h.b16 %v185
    %v236 = vunpack.c.l.b16 %v186
    %v237 = vunpack.c.h.b16 %v186
    %v238 = vunpack.c.l.b16 %v187
    %v239 = vunpack.c.h.b16 %v187
    %v240 = vunpack.c.l.b16 %v188
    %v241 = vunpack.c.h.b16 %v188
    %v242 = vunpack.c.l.b16 %v189
    %v243 = vunpack.c.h.b16 %v189
    %v244 = vunpack.c.l.b16 %v190
    %v245 = vunpack.c.h.b16 %v190
    %v246 = vunpack.c.l.b16 %v191
    %v247 = vunpack.c.h.b16 %v191
    %v248 = vunpack.c.l.b16 %v192
    %v249 = vunpack.c.h.b16 %v192
    %v250 = vunpack.c.l.b16 %v193
    %v251 = vunpack.c.h.b16 %v193
    %v252 = vunpack.c.l.b16 %v194
    %v253 = vunpack.c.h.b16 %v194
    %v254 = vunpack.c.l.b16 %v195
    %v255 = vunpack.c.h.b16 %v195
    %v256 = vpack.c.b16 %v226, %v224
    %v257 = vpack.c.b16 %v227, %v225
    %v258 = vpack.c.b16 %v230, %v228
    %v259 = vpack.c.b16 %v231, %v229
    %v260 = vpack.c.b16 %v234, %v232
    %v261 = vpack.c.b16 %v235, %v233
    %v262 = vpack.c.b16 %v238, %v236
    %v263 = vpack.c.b16 %v239, %v237
    %v264 = vpack.c.b16 %v242, %v240
    %v265 = vpack.c.b16 %v243, %v241
    %v266 = vpack.c.b16 %v246, %v244
    %v267 = vpack.c.b16 %v247, %v245
    %v268 = vpack.c.b16 %v250, %v248
    %v269 = vpack.c.b16 %v251, %v249
    %v270 = vpack.c.b16 %v254, %v252
    %v271 = vpack.c.b16 %v255, %v253
    %288 = vmatprep.subr.bf16.mxu0 %v257
    %289 = vmatpush1.bf16.msra.mxu0 %v256
    %290 = vmatprep.subr.bf16.mxu0 %v259
    %291 = vmatpush1.bf16.msra.mxu0 %v258
    %292 = vmatprep.subr.bf16.mxu0 %v261
    %293 = vmatpush1.bf16.msra.mxu0 %v260
    %294 = vmatprep.subr.bf16.mxu0 %v263
    %295 = vmatpush1.bf16.msra.mxu0 %v262
    %296 = vmatprep.subr.bf16.mxu0 %v265
    %297 = vmatpush1.bf16.msra.mxu0 %v264
    %298 = vmatprep.subr.bf16.mxu0 %v267
    %299 = vmatpush1.bf16.msra.mxu0 %v266
    %300 = vmatprep.subr.bf16.mxu0 %v269
    %301 = vmatpush1.bf16.msra.mxu0 %v268
    %302 = vmatprep.subr.bf16.mxu0 %v271
    %303 = vmatpush1.bf16.msra.mxu0 %v270
    %304 = vmatprep.subr.bf16.mxu0 0
    %305 = vmatpush1.bf16.msra.mxu0 0
    %306 = vmatprep.subr.bf16.mxu0 0
    %307 = vmatpush1.bf16.msra.mxu0 0
    %308 = vmatprep.subr.bf16.mxu0 0
    %309 = vmatpush1.bf16.msra.mxu0 0
    %310 = vmatprep.subr.bf16.mxu0 0
    %311 = vmatpush1.bf16.msra.mxu0 0
    %312 = vmatprep.subr.bf16.mxu0 0
    %313 = vmatpush1.bf16.msra.mxu0 0
    %314 = vmatprep.subr.bf16.mxu0 0
    %315 = vmatpush1.bf16.msra.mxu0 0
    %316 = vmatprep.subr.bf16.mxu0 0
    %317 = vmatpush1.bf16.msra.mxu0 0
    %318 = vmatprep.subr.bf16.mxu0 0
    %319 = vmatpush1.bf16.msra.mxu0 0
    %320 = vmatprep.mubr.bf16.mxu0 0
    %321 = vmatmul.mubr.bf16.gmra.mrb[0].mxu0 %v179
    %v322 = vpop.f32.mrb[0].mxu0
    %v323 = vadd.f32 %v201, %v322
    %v324 = vpop.f32.mrb[0].mxu0
    %v325 = vadd.f32 %v205, %v324
    %v326 = vpop.f32.mrb[0].mxu0
    %v327 = vadd.f32 %v201, %v326
    %v328 = vpop.f32.mrb[0].mxu0
    %v329 = vadd.f32 %v205, %v328
    %330 = vdwg.mxu0
    %vm331 = vcmp.ge.f32.partialorder %v323, 0.0
    %vm332 = vcmp.ge.f32.partialorder %v325, 0.0
    %vm333 = vcmp.ge.f32.partialorder %v327, 0.0
    %vm334 = vcmp.ge.f32.partialorder %v329, 0.0
    %v335 = vmul.f32 %v323, 0.2
    %v336 = vmul.f32 %v325, 0.2
    %v337 = vmul.f32 %v327, 0.2
    %v338 = vmul.f32 %v329, 0.2
    %v339 = vsel %vm331, %v323, %v335
    %v340 = vsel %vm332, %v325, %v336
    %v341 = vsel %vm333, %v327, %v337
    %v342 = vsel %vm334, %v329, %v338
    %v343 = vpack.c.bf16 %v341, %v339
    %v344 = vpack.c.bf16 %v342, %v340
    %v345 = vld [vmem:[#allocation8] sm:$0xff]
    %v346 = vld [vmem:[#allocation8 + $0x8] sm:$0xff]
    %v347 = vld [vmem:[#allocation8 + $0x10] sm:$0xff]
    %v348 = vld [vmem:[#allocation8 + $0x18] sm:$0xff]
    %v349 = vld [vmem:[#allocation8 + $0x20] sm:$0xff]
    %v350 = vld [vmem:[#allocation8 + $0x28] sm:$0xff]
    %v351 = vld [vmem:[#allocation8 + $0x30] sm:$0xff]
    %v352 = vld [vmem:[#allocation8 + $0x38] sm:$0xff]
    %v353 = vld [vmem:[#allocation8 + $0x40] sm:$0xff]
    %v354 = vld [vmem:[#allocation8 + $0x48] sm:$0xff]
    %v355 = vld [vmem:[#allocation8 + $0x50] sm:$0xff]
    %v356 = vld [vmem:[#allocation8 + $0x58] sm:$0xff]
    %v357 = vld [vmem:[#allocation8 + $0x60] sm:$0xff]
    %v358 = vld [vmem:[#allocation8 + $0x68] sm:$0xff]
    %v359 = vld [vmem:[#allocation8 + $0x70] sm:$0xff]
    %v360 = vld [vmem:[#allocation8 + $0x78] sm:$0xff]
    %v361 = vld [vmem:[#allocation8 + $0x80] sm:$0xff]
    %v362 = vld [vmem:[#allocation8 + $0x88] sm:$0xff]
    %v363 = vld [vmem:[#allocation8 + $0x90] sm:$0xff]
    %v364 = vld [vmem:[#allocation8 + $0x98] sm:$0xff]
    %v365 = vld [vmem:[#allocation8 + $0xa0] sm:$0xff]
    %v366 = vld [vmem:[#allocation8 + $0xa8] sm:$0xff]
    %v367 = vld [vmem:[#allocation8 + $0xb0] sm:$0xff]
    %v368 = vld [vmem:[#allocation8 + $0xb8] sm:$0xff]
    %v369 = vld [vmem:[#allocation8 + $0xc0] sm:$0xff]
    %v370 = vld [vmem:[#allocation8 + $0xc8] sm:$0xff]
    %v371 = vld [vmem:[#allocation8 + $0xd0] sm:$0xff]
    %v372 = vld [vmem:[#allocation8 + $0xd8] sm:$0xff]
    %v373 = vld [vmem:[#allocation8 + $0xe0] sm:$0xff]
    %v374 = vld [vmem:[#allocation8 + $0xe8] sm:$0xff]
    %v375 = vld [vmem:[#allocation8 + $0xf0] sm:$0xff]
    %v376 = vld [vmem:[#allocation8 + $0xf8] sm:$0xff]
    %v377 = vld [vmem:[#allocation8 + $0x100] sm:$0xff]
    %v378 = vld [vmem:[#allocation8 + $0x108] sm:$0xff]
    %v379 = vld [vmem:[#allocation8 + $0x110] sm:$0xff]
    %v380 = vld [vmem:[#allocation8 + $0x118] sm:$0xff]
    %v381 = vld [vmem:[#allocation8 + $0x120] sm:$0xff]
    %v382 = vld [vmem:[#allocation8 + $0x128] sm:$0xff]
    %v383 = vld [vmem:[#allocation8 + $0x130] sm:$0xff]
    %v384 = vld [vmem:[#allocation8 + $0x138] sm:$0xff]
    %v385 = vld [vmem:[#allocation8 + $0x140] sm:$0xff]
    %v386 = vld [vmem:[#allocation8 + $0x148] sm:$0xff]
    %v387 = vld [vmem:[#allocation8 + $0x150] sm:$0xff]
    %v388 = vld [vmem:[#allocation8 + $0x158] sm:$0xff]
    %v389 = vld [vmem:[#allocation8 + $0x160] sm:$0xff]
    %v390 = vld [vmem:[#allocation8 + $0x168] sm:$0xff]
    %v391 = vld [vmem:[#allocation8 + $0x170] sm:$0xff]
    %v392 = vld [vmem:[#allocation8 + $0x178] sm:$0xff]
    %v393 = vld [vmem:[#allocation8 + $0x180] sm:$0xff]
    %v394 = vld [vmem:[#allocation8 + $0x188] sm:$0xff]
    %v395 = vld [vmem:[#allocation8 + $0x190] sm:$0xff]
    %v396 = vld [vmem:[#allocation8 + $0x198] sm:$0xff]
    %v397 = vld [vmem:[#allocation8 + $0x1a0] sm:$0xff]
    %v398 = vld [vmem:[#allocation8 + $0x1a8] sm:$0xff]
    %v399 = vld [vmem:[#allocation8 + $0x1b0] sm:$0xff]
    %v400 = vld [vmem:[#allocation8 + $0x1b8] sm:$0xff]
    %v401 = vld [vmem:[#allocation8 + $0x1c0] sm:$0xff]
    %v402 = vld [vmem:[#allocation8 + $0x1c8] sm:$0xff]
    %v403 = vld [vmem:[#allocation8 + $0x1d0] sm:$0xff]
    %v404 = vld [vmem:[#allocation8 + $0x1d8] sm:$0xff]
    %v405 = vld [vmem:[#allocation8 + $0x1e0] sm:$0xff]
    %v406 = vld [vmem:[#allocation8 + $0x1e8] sm:$0xff]
    %v407 = vld [vmem:[#allocation8 + $0x1f0] sm:$0xff]
    %v408 = vld [vmem:[#allocation8 + $0x1f8] sm:$0xff]
    %v409 = vld [vmem:[%s6] sm:$0xf]
    %v411 = vlaneseq
    %v412 = vshrl.u32 %v411, 7
    %v413 = vsub.s32 0, %v412
    %v414 = vrot.slane %v409, %v413
    %v415 = vlaneseq
    %v416 = vshrl.u32 %v415, 7
    %v417 = vsub.s32 1, %v416
    %v418 = vrot.slane %v409, %v417
    %v419 = vlaneseq
    %v420 = vshrl.u32 %v419, 7
    %v421 = vsub.s32 2, %v420
    %v422 = vrot.slane %v409, %v421
    %v423 = vlaneseq
    %v424 = vshrl.u32 %v423, 7
    %v425 = vsub.s32 3, %v424
    %v426 = vrot.slane %v409, %v425
    %v495 = vunpack.c.l.b16 %v345
    %v496 = vunpack.c.h.b16 %v345
    %v497 = vunpack.c.l.b16 %v346
    %v498 = vunpack.c.h.b16 %v346
    %v499 = vunpack.c.l.b16 %v347
    %v500 = vunpack.c.h.b16 %v347
    %v501 = vunpack.c.l.b16 %v348
    %v502 = vunpack.c.h.b16 %v348
    %v503 = vunpack.c.l.b16 %v349
    %v504 = vunpack.c.h.b16 %v349
    %v505 = vunpack.c.l.b16 %v350
    %v506 = vunpack.c.h.b16 %v350
    %v507 = vunpack.c.l.b16 %v351
    %v508 = vunpack.c.h.b16 %v351
    %v509 = vunpack.c.l.b16 %v352
    %v510 = vunpack.c.h.b16 %v352
    %v511 = vunpack.c.l.b16 %v353
    %v512 = vunpack.c.h.b16 %v353
    %v513 = vunpack.c.l.b16 %v354
    %v514 = vunpack.c.h.b16 %v354
    %v515 = vunpack.c.l.b16 %v355
    %v516 = vunpack.c.h.b16 %v355
    %v517 = vunpack.c.l.b16 %v356
    %v518 = vunpack.c.h.b16 %v356
    %v519 = vunpack.c.l.b16 %v357
    %v520 = vunpack.c.h.b16 %v357
    %v521 = vunpack.c.l.b16 %v358
    %v522 = vunpack.c.h.b16 %v358
    %v523 = vunpack.c.l.b16 %v359
    %v524 = vunpack.c.h.b16 %v359
    %v525 = vunpack.c.l.b16 %v360
    %v526 = vunpack.c.h.b16 %v360
    %v527 = vunpack.c.l.b16 %v361
    %v528 = vunpack.c.h.b16 %v361
    %v529 = vunpack.c.l.b16 %v362
    %v530 = vunpack.c.h.b16 %v362
    %v531 = vunpack.c.l.b16 %v363
    %v532 = vunpack.c.h.b16 %v363
    %v533 = vunpack.c.l.b16 %v364
    %v534 = vunpack.c.h.b16 %v364
    %v535 = vunpack.c.l.b16 %v365
    %v536 = vunpack.c.h.b16 %v365
    %v537 = vunpack.c.l.b16 %v366
    %v538 = vunpack.c.h.b16 %v366
    %v539 = vunpack.c.l.b16 %v367
    %v540 = vunpack.c.h.b16 %v367
    %v541 = vunpack.c.l.b16 %v368
    %v542 = vunpack.c.h.b16 %v368
    %v543 = vunpack.c.l.b16 %v369
    %v544 = vunpack.c.h.b16 %v369
    %v545 = vunpack.c.l.b16 %v370
    %v546 = vunpack.c.h.b16 %v370
    %v547 = vunpack.c.l.b16 %v371
    %v548 = vunpack.c.h.b16 %v371
    %v549 = vunpack.c.l.b16 %v372
    %v550 = vunpack.c.h.b16 %v372
    %v551 = vunpack.c.l.b16 %v373
    %v552 = vunpack.c.h.b16 %v373
    %v553 = vunpack.c.l.b16 %v374
    %v554 = vunpack.c.h.b16 %v374
    %v555 = vunpack.c.l.b16 %v375
    %v556 = vunpack.c.h.b16 %v375
    %v557 = vunpack.c.l.b16 %v376
    %v558 = vunpack.c.h.b16 %v376
    %v559 = vunpack.c.l.b16 %v377
    %v560 = vunpack.c.h.b16 %v377
    %v561 = vunpack.c.l.b16 %v378
    %v562 = vunpack.c.h.b16 %v378
    %v563 = vunpack.c.l.b16 %v379
    %v564 = vunpack.c.h.b16 %v379
    %v565 = vunpack.c.l.b16 %v380
    %v566 = vunpack.c.h.b16 %v380
    %v567 = vunpack.c.l.b16 %v381
    %v568 = vunpack.c.h.b16 %v381
    %v569 = vunpack.c.l.b16 %v382
    %v570 = vunpack.c.h.b16 %v382
    %v571 = vunpack.c.l.b16 %v383
    %v572 = vunpack.c.h.b16 %v383
    %v573 = vunpack.c.l.b16 %v384
    %v574 = vunpack.c.h.b16 %v384
    %v575 = vunpack.c.l.b16 %v385
    %v576 = vunpack.c.h.b16 %v385
    %v577 = vunpack.c.l.b16 %v386
    %v578 = vunpack.c.h.b16 %v386
    %v579 = vunpack.c.l.b16 %v387
    %v580 = vunpack.c.h.b16 %v387
    %v581 = vunpack.c.l.b16 %v388
    %v582 = vunpack.c.h.b16 %v388
    %v583 = vunpack.c.l.b16 %v389
    %v584 = vunpack.c.h.b16 %v389
    %v585 = vunpack.c.l.b16 %v390
    %v586 = vunpack.c.h.b16 %v390
    %v587 = vunpack.c.l.b16 %v391
    %v588 = vunpack.c.h.b16 %v391
    %v589 = vunpack.c.l.b16 %v392
    %v590 = vunpack.c.h.b16 %v392
    %v591 = vunpack.c.l.b16 %v393
    %v592 = vunpack.c.h.b16 %v393
    %v593 = vunpack.c.l.b16 %v394
    %v594 = vunpack.c.h.b16 %v394
    %v595 = vunpack.c.l.b16 %v395
    %v596 = vunpack.c.h.b16 %v395
    %v597 = vunpack.c.l.b16 %v396
    %v598 = vunpack.c.h.b16 %v396
    %v599 = vunpack.c.l.b16 %v397
    %v600 = vunpack.c.h.b16 %v397
    %v601 = vunpack.c.l.b16 %v398
    %v602 = vunpack.c.h.b16 %v398
    %v603 = vunpack.c.l.b16 %v399
    %v604 = vunpack.c.h.b16 %v399
    %v605 = vunpack.c.l.b16 %v400
    %v606 = vunpack.c.h.b16 %v400
    %v607 = vunpack.c.l.b16 %v401
    %v608 = vunpack.c.h.b16 %v401
    %v609 = vunpack.c.l.b16 %v402
    %v610 = vunpack.c.h.b16 %v402
    %v611 = vunpack.c.l.b16 %v403
    %v612 = vunpack.c.h.b16 %v403
    %v613 = vunpack.c.l.b16 %v404
    %v614 = vunpack.c.h.b16 %v404
    %v615 = vunpack.c.l.b16 %v405
    %v616 = vunpack.c.h.b16 %v405
    %v617 = vunpack.c.l.b16 %v406
    %v618 = vunpack.c.h.b16 %v406
    %v619 = vunpack.c.l.b16 %v407
    %v620 = vunpack.c.h.b16 %v407
    %v621 = vunpack.c.l.b16 %v408
    %v622 = vunpack.c.h.b16 %v408
    %v623 = vpack.c.b16 %v499, %v495
    %v624 = vpack.c.b16 %v500, %v496
    %v625 = vpack.c.b16 %v501, %v497
    %v626 = vpack.c.b16 %v502, %v498
    %v627 = vpack.c.b16 %v507, %v503
    %v628 = vpack.c.b16 %v508, %v504
    %v629 = vpack.c.b16 %v509, %v505
    %v630 = vpack.c.b16 %v510, %v506
    %v631 = vpack.c.b16 %v515, %v511
    %v632 = vpack.c.b16 %v516, %v512
    %v633 = vpack.c.b16 %v517, %v513
    %v634 = vpack.c.b16 %v518, %v514
    %v635 = vpack.c.b16 %v523, %v519
    %v636 = vpack.c.b16 %v524, %v520
    %v637 = vpack.c.b16 %v525, %v521
    %v638 = vpack.c.b16 %v526, %v522
    %v639 = vpack.c.b16 %v531, %v527
    %v640 = vpack.c.b16 %v532, %v528
    %v641 = vpack.c.b16 %v533, %v529
    %v642 = vpack.c.b16 %v534, %v530
    %v643 = vpack.c.b16 %v539, %v535
    %v644 = vpack.c.b16 %v540, %v536
    %v645 = vpack.c.b16 %v541, %v537
    %v646 = vpack.c.b16 %v542, %v538
    %v647 = vpack.c.b16 %v547, %v543
    %v648 = vpack.c.b16 %v548, %v544
    %v649 = vpack.c.b16 %v549, %v545
    %v650 = vpack.c.b16 %v550, %v546
    %v651 = vpack.c.b16 %v555, %v551
    %v652 = vpack.c.b16 %v556, %v552
    %v653 = vpack.c.b16 %v557, %v553
    %v654 = vpack.c.b16 %v558, %v554
    %v655 = vpack.c.b16 %v563, %v559
    %v656 = vpack.c.b16 %v564, %v560
    %v657 = vpack.c.b16 %v565, %v561
    %v658 = vpack.c.b16 %v566, %v562
    %v659 = vpack.c.b16 %v571, %v567
    %v660 = vpack.c.b16 %v572, %v568
    %v661 = vpack.c.b16 %v573, %v569
    %v662 = vpack.c.b16 %v574, %v570
    %v663 = vpack.c.b16 %v579, %v575
    %v664 = vpack.c.b16 %v580, %v576
    %v665 = vpack.c.b16 %v581, %v577
    %v666 = vpack.c.b16 %v582, %v578
    %v667 = vpack.c.b16 %v587, %v583
    %v668 = vpack.c.b16 %v588, %v584
    %v669 = vpack.c.b16 %v589, %v585
    %v670 = vpack.c.b16 %v590, %v586
    %v671 = vpack.c.b16 %v595, %v591
    %v672 = vpack.c.b16 %v596, %v592
    %v673 = vpack.c.b16 %v597, %v593
    %v674 = vpack.c.b16 %v598, %v594
    %v675 = vpack.c.b16 %v603, %v599
    %v676 = vpack.c.b16 %v604, %v600
    %v677 = vpack.c.b16 %v605, %v601
    %v678 = vpack.c.b16 %v606, %v602
    %v679 = vpack.c.b16 %v611, %v607
    %v680 = vpack.c.b16 %v612, %v608
    %v681 = vpack.c.b16 %v613, %v609
    %v682 = vpack.c.b16 %v614, %v610
    %v683 = vpack.c.b16 %v619, %v615
    %v684 = vpack.c.b16 %v620, %v616
    %v685 = vpack.c.b16 %v621, %v617
    %v686 = vpack.c.b16 %v622, %v618
    %751 = vmatprep.subr.bf16.mxu0 %v624
    %752 = vmatpush1.bf16.msra.mxu0 %v623
    %753 = vmatprep.subr.bf16.mxu0 %v628
    %754 = vmatpush1.bf16.msra.mxu0 %v627
    %755 = vmatprep.subr.bf16.mxu0 %v632
    %756 = vmatpush1.bf16.msra.mxu0 %v631
    %757 = vmatprep.subr.bf16.mxu0 %v636
    %758 = vmatpush1.bf16.msra.mxu0 %v635
    %759 = vmatprep.subr.bf16.mxu0 %v640
    %760 = vmatpush1.bf16.msra.mxu0 %v639
    %761 = vmatprep.subr.bf16.mxu0 %v644
    %762 = vmatpush1.bf16.msra.mxu0 %v643
    %763 = vmatprep.subr.bf16.mxu0 %v648
    %764 = vmatpush1.bf16.msra.mxu0 %v647
    %765 = vmatprep.subr.bf16.mxu0 %v652
    %766 = vmatpush1.bf16.msra.mxu0 %v651
    %767 = vmatprep.subr.bf16.mxu0 %v656
    %768 = vmatpush1.bf16.msra.mxu0 %v655
    %769 = vmatprep.subr.bf16.mxu0 %v660
    %770 = vmatpush1.bf16.msra.mxu0 %v659
    %771 = vmatprep.subr.bf16.mxu0 %v664
    %772 = vmatpush1.bf16.msra.mxu0 %v663
    %773 = vmatprep.subr.bf16.mxu0 %v668
    %774 = vmatpush1.bf16.msra.mxu0 %v667
    %775 = vmatprep.subr.bf16.mxu0 %v672
    %776 = vmatpush1.bf16.msra.mxu0 %v671
    %777 = vmatprep.subr.bf16.mxu0 %v676
    %778 = vmatpush1.bf16.msra.mxu0 %v675
    %779 = vmatprep.subr.bf16.mxu0 %v680
    %780 = vmatpush1.bf16.msra.mxu0 %v679
    %781 = vmatprep.subr.bf16.mxu0 %v684
    %782 = vmatpush1.bf16.msra.mxu0 %v683
    %783 = vmatprep.mubr.bf16.mxu0 %v344
    %784 = vmatmul.mubr.bf16.gmra.mrb[0].mxu0 %v343
    %v785 = vpop.f32.mrb[0].mxu0
    %v786 = vadd.f32 %v414, %v785
    %v787 = vpop.f32.mrb[0].mxu0
    %v788 = vadd.f32 %v418, %v787
    %v789 = vpop.f32.mrb[0].mxu0
    %v790 = vadd.f32 %v414, %v789
    %v791 = vpop.f32.mrb[0].mxu0
    %v792 = vadd.f32 %v418, %v791
    %793 = vdwg.mxu0
    %794 = vmatprep.subr.bf16.mxu0 %v626
    %795 = vmatpush1.bf16.msra.mxu0 %v625
    %796 = vmatprep.subr.bf16.mxu0 %v630
    %797 = vmatpush1.bf16.msra.mxu0 %v629
    %798 = vmatprep.subr.bf16.mxu0 %v634
    %799 = vmatpush1.bf16.msra.mxu0 %v633
    %800 = vmatprep.subr.bf16.mxu0 %v638
    %801 = vmatpush1.bf16.msra.mxu0 %v637
    %802 = vmatprep.subr.bf16.mxu0 %v642
    %803 = vmatpush1.bf16.msra.mxu0 %v641
    %804 = vmatprep.subr.bf16.mxu0 %v646
    %805 = vmatpush1.bf16.msra.mxu0 %v645
    %806 = vmatprep.subr.bf16.mxu0 %v650
    %807 = vmatpush1.bf16.msra.mxu0 %v649
    %808 = vmatprep.subr.bf16.mxu0 %v654
    %809 = vmatpush1.bf16.msra.mxu0 %v653
    %810 = vmatprep.subr.bf16.mxu0 %v658
    %811 = vmatpush1.bf16.msra.mxu0 %v657
    %812 = vmatprep.subr.bf16.mxu0 %v662
    %813 = vmatpush1.bf16.msra.mxu0 %v661
    %814 = vmatprep.subr.bf16.mxu0 %v666
    %815 = vmatpush1.bf16.msra.mxu0 %v665
    %816 = vmatprep.subr.bf16.mxu0 %v670
    %817 = vmatpush1.bf16.msra.mxu0 %v669
    %818 = vmatprep.subr.bf16.mxu0 %v674
    %819 = vmatpush1.bf16.msra.mxu0 %v673
    %820 = vmatprep.subr.bf16.mxu0 %v678
    %821 = vmatpush1.bf16.msra.mxu0 %v677
    %822 = vmatprep.subr.bf16.mxu0 %v682
    %823 = vmatpush1.bf16.msra.mxu0 %v681
    %824 = vmatprep.subr.bf16.mxu0 %v686
    %825 = vmatpush1.bf16.msra.mxu0 %v685
    %826 = vmatprep.mubr.bf16.mxu0 %v344
    %827 = vmatmul.mubr.bf16.gmra.mrb[0].mxu0 %v343
    %v828 = vpop.f32.mrb[0].mxu0
    %v829 = vadd.f32 %v422, %v828
    %v830 = vpop.f32.mrb[0].mxu0
    %v831 = vadd.f32 %v426, %v830
    %v832 = vpop.f32.mrb[0].mxu0
    %v833 = vadd.f32 %v422, %v832
    %v834 = vpop.f32.mrb[0].mxu0
    %v835 = vadd.f32 %v426, %v834
    %836 = vdwg.mxu0
    %vm837 = vcmp.ge.f32.partialorder %v786, 0.0
    %vm838 = vcmp.ge.f32.partialorder %v788, 0.0
    %vm839 = vcmp.ge.f32.partialorder %v829, 0.0
    %vm840 = vcmp.ge.f32.partialorder %v831, 0.0
    %vm841 = vcmp.ge.f32.partialorder %v790, 0.0
    %vm842 = vcmp.ge.f32.partialorder %v792, 0.0
    %vm843 = vcmp.ge.f32.partialorder %v833, 0.0
    %vm844 = vcmp.ge.f32.partialorder %v835, 0.0
    %v845 = vmul.f32 %v786, 0.2
    %v846 = vmul.f32 %v788, 0.2
    %v847 = vmul.f32 %v829, 0.2
    %v848 = vmul.f32 %v831, 0.2
    %v849 = vmul.f32 %v790, 0.2
    %v850 = vmul.f32 %v792, 0.2
    %v851 = vmul.f32 %v833, 0.2
    %v852 = vmul.f32 %v835, 0.2
    %v853 = vsel %vm837, %v786, %v845
    %v854 = vsel %vm838, %v788, %v846
    %v855 = vsel %vm839, %v829, %v847
    %v856 = vsel %vm840, %v831, %v848
    %v857 = vsel %vm841, %v790, %v849
    %v858 = vsel %vm842, %v792, %v850
    %v859 = vsel %vm843, %v833, %v851
    %v860 = vsel %vm844, %v835, %v852
    %v861 = vpack.c.bf16 %v857, %v853
    %v862 = vpack.c.bf16 %v858, %v854
    %v863 = vpack.c.bf16 %v859, %v855
    %v864 = vpack.c.bf16 %v860, %v856
    %v865 = vld [vmem:[#allocation10] sm:$0xff]
    %v866 = vld [vmem:[#allocation10 + $0x8] sm:$0xff]
    %v867 = vld [vmem:[#allocation10 + $0x10] sm:$0xff]
    %v868 = vld [vmem:[#allocation10 + $0x18] sm:$0xff]
    %v869 = vld [vmem:[#allocation10 + $0x20] sm:$0xff]
    %v870 = vld [vmem:[#allocation10 + $0x28] sm:$0xff]
    %v871 = vld [vmem:[#allocation10 + $0x30] sm:$0xff]
    %v872 = vld [vmem:[#allocation10 + $0x38] sm:$0xff]
    %v873 = vld [vmem:[#allocation10 + $0x40] sm:$0xff]
    %v874 = vld [vmem:[#allocation10 + $0x48] sm:$0xff]
    %v875 = vld [vmem:[#allocation10 + $0x50] sm:$0xff]
    %v876 = vld [vmem:[#allocation10 + $0x58] sm:$0xff]
    %v877 = vld [vmem:[#allocation10 + $0x60] sm:$0xff]
    %v878 = vld [vmem:[#allocation10 + $0x68] sm:$0xff]
    %v879 = vld [vmem:[#allocation10 + $0x70] sm:$0xff]
    %v880 = vld [vmem:[#allocation10 + $0x78] sm:$0xff]
    %v881 = vld [vmem:[#allocation10 + $0x80] sm:$0xff]
    %v882 = vld [vmem:[#allocation10 + $0x88] sm:$0xff]
    %v883 = vld [vmem:[#allocation10 + $0x90] sm:$0xff]
    %v884 = vld [vmem:[#allocation10 + $0x98] sm:$0xff]
    %v885 = vld [vmem:[#allocation10 + $0xa0] sm:$0xff]
    %v886 = vld [vmem:[#allocation10 + $0xa8] sm:$0xff]
    %v887 = vld [vmem:[#allocation10 + $0xb0] sm:$0xff]
    %v888 = vld [vmem:[#allocation10 + $0xb8] sm:$0xff]
    %v889 = vld [vmem:[#allocation10 + $0xc0] sm:$0xff]
    %v890 = vld [vmem:[#allocation10 + $0xc8] sm:$0xff]
    %v891 = vld [vmem:[#allocation10 + $0xd0] sm:$0xff]
    %v892 = vld [vmem:[#allocation10 + $0xd8] sm:$0xff]
    %v893 = vld [vmem:[#allocation10 + $0xe0] sm:$0xff]
    %v894 = vld [vmem:[#allocation10 + $0xe8] sm:$0xff]
    %v895 = vld [vmem:[#allocation10 + $0xf0] sm:$0xff]
    %v896 = vld [vmem:[#allocation10 + $0xf8] sm:$0xff]
    %v897 = vld [vmem:[#allocation10 + $0x100] sm:$0xff]
    %v898 = vld [vmem:[#allocation10 + $0x108] sm:$0xff]
    %v899 = vld [vmem:[#allocation10 + $0x110] sm:$0xff]
    %v900 = vld [vmem:[#allocation10 + $0x118] sm:$0xff]
    %v901 = vld [vmem:[#allocation10 + $0x120] sm:$0xff]
    %v902 = vld [vmem:[#allocation10 + $0x128] sm:$0xff]
    %v903 = vld [vmem:[#allocation10 + $0x130] sm:$0xff]
    %v904 = vld [vmem:[#allocation10 + $0x138] sm:$0xff]
    %v905 = vld [vmem:[#allocation10 + $0x140] sm:$0xff]
    %v906 = vld [vmem:[#allocation10 + $0x148] sm:$0xff]
    %v907 = vld [vmem:[#allocation10 + $0x150] sm:$0xff]
    %v908 = vld [vmem:[#allocation10 + $0x158] sm:$0xff]
    %v909 = vld [vmem:[#allocation10 + $0x160] sm:$0xff]
    %v910 = vld [vmem:[#allocation10 + $0x168] sm:$0xff]
    %v911 = vld [vmem:[#allocation10 + $0x170] sm:$0xff]
    %v912 = vld [vmem:[#allocation10 + $0x178] sm:$0xff]
    %v913 = vld [vmem:[#allocation10 + $0x180] sm:$0xff]
    %v914 = vld [vmem:[#allocation10 + $0x188] sm:$0xff]
    %v915 = vld [vmem:[#allocation10 + $0x190] sm:$0xff]
    %v916 = vld [vmem:[#allocation10 + $0x198] sm:$0xff]
    %v917 = vld [vmem:[#allocation10 + $0x1a0] sm:$0xff]
    %v918 = vld [vmem:[#allocation10 + $0x1a8] sm:$0xff]
    %v919 = vld [vmem:[#allocation10 + $0x1b0] sm:$0xff]
    %v920 = vld [vmem:[#allocation10 + $0x1b8] sm:$0xff]
    %v921 = vld [vmem:[#allocation10 + $0x1c0] sm:$0xff]
    %v922 = vld [vmem:[#allocation10 + $0x1c8] sm:$0xff]
    %v923 = vld [vmem:[#allocation10 + $0x1d0] sm:$0xff]
    %v924 = vld [vmem:[#allocation10 + $0x1d8] sm:$0xff]
    %v925 = vld [vmem:[#allocation10 + $0x1e0] sm:$0xff]
    %v926 = vld [vmem:[#allocation10 + $0x1e8] sm:$0xff]
    %v927 = vld [vmem:[#allocation10 + $0x1f0] sm:$0xff]
    %v928 = vld [vmem:[#allocation10 + $0x1f8] sm:$0xff]
    %v929 = vld [vmem:[%s8] sm:$0x3]
    %v931 = vlaneseq
    %v932 = vshrl.u32 %v931, 7
    %v933 = vsub.s32 0, %v932
    %v934 = vrot.slane %v929, %v933
    %v935 = vlaneseq
    %v936 = vshrl.u32 %v935, 7
    %v937 = vsub.s32 1, %v936
    %v938 = vrot.slane %v929, %v937
    %v1005 = vunpack.c.l.b16 %v865
    %v1006 = vunpack.c.h.b16 %v865
    %v1007 = vunpack.c.l.b16 %v866
    %v1008 = vunpack.c.h.b16 %v866
    %v1009 = vunpack.c.l.b16 %v867
    %v1010 = vunpack.c.h.b16 %v867
    %v1011 = vunpack.c.l.b16 %v868
    %v1012 = vunpack.c.h.b16 %v868
    %v1013 = vunpack.c.l.b16 %v869
    %v1014 = vunpack.c.h.b16 %v869
    %v1015 = vunpack.c.l.b16 %v870
    %v1016 = vunpack.c.h.b16 %v870
    %v1017 = vunpack.c.l.b16 %v871
    %v1018 = vunpack.c.h.b16 %v871
    %v1019 = vunpack.c.l.b16 %v872
    %v1020 = vunpack.c.h.b16 %v872
    %v1021 = vunpack.c.l.b16 %v873
    %v1022 = vunpack.c.h.b16 %v873
    %v1023 = vunpack.c.l.b16 %v874
    %v1024 = vunpack.c.h.b16 %v874
    %v1025 = vunpack.c.l.b16 %v875
    %v1026 = vunpack.c.h.b16 %v875
    %v1027 = vunpack.c.l.b16 %v876
    %v1028 = vunpack.c.h.b16 %v876
    %v1029 = vunpack.c.l.b16 %v877
    %v1030 = vunpack.c.h.b16 %v877
    %v1031 = vunpack.c.l.b16 %v878
    %v1032 = vunpack.c.h.b16 %v878
    %v1033 = vunpack.c.l.b16 %v879
    %v1034 = vunpack.c.h.b16 %v879
    %v1035 = vunpack.c.l.b16 %v880
    %v1036 = vunpack.c.h.b16 %v880
    %v1037 = vunpack.c.l.b16 %v881
    %v1038 = vunpack.c.h.b16 %v881
    %v1039 = vunpack.c.l.b16 %v882
    %v1040 = vunpack.c.h.b16 %v882
    %v1041 = vunpack.c.l.b16 %v883
    %v1042 = vunpack.c.h.b16 %v883
    %v1043 = vunpack.c.l.b16 %v884
    %v1044 = vunpack.c.h.b16 %v884
    %v1045 = vunpack.c.l.b16 %v885
    %v1046 = vunpack.c.h.b16 %v885
    %v1047 = vunpack.c.l.b16 %v886
    %v1048 = vunpack.c.h.b16 %v886
    %v1049 = vunpack.c.l.b16 %v887
    %v1050 = vunpack.c.h.b16 %v887
    %v1051 = vunpack.c.l.b16 %v888
    %v1052 = vunpack.c.h.b16 %v888
    %v1053 = vunpack.c.l.b16 %v889
    %v1054 = vunpack.c.h.b16 %v889
    %v1055 = vunpack.c.l.b16 %v890
    %v1056 = vunpack.c.h.b16 %v890
    %v1057 = vunpack.c.l.b16 %v891
    %v1058 = vunpack.c.h.b16 %v891
    %v1059 = vunpack.c.l.b16 %v892
    %v1060 = vunpack.c.h.b16 %v892
    %v1061 = vunpack.c.l.b16 %v893
    %v1062 = vunpack.c.h.b16 %v893
    %v1063 = vunpack.c.l.b16 %v894
    %v1064 = vunpack.c.h.b16 %v894
    %v1065 = vunpack.c.l.b16 %v895
    %v1066 = vunpack.c.h.b16 %v895
    %v1067 = vunpack.c.l.b16 %v896
    %v1068 = vunpack.c.h.b16 %v896
    %v1069 = vunpack.c.l.b16 %v897
    %v1070 = vunpack.c.h.b16 %v897
    %v1071 = vunpack.c.l.b16 %v898
    %v1072 = vunpack.c.h.b16 %v898
    %v1073 = vunpack.c.l.b16 %v899
    %v1074 = vunpack.c.h.b16 %v899
    %v1075 = vunpack.c.l.b16 %v900
    %v1076 = vunpack.c.h.b16 %v900
    %v1077 = vunpack.c.l.b16 %v901
    %v1078 = vunpack.c.h.b16 %v901
    %v1079 = vunpack.c.l.b16 %v902
    %v1080 = vunpack.c.h.b16 %v902
    %v1081 = vunpack.c.l.b16 %v903
    %v1082 = vunpack.c.h.b16 %v903
    %v1083 = vunpack.c.l.b16 %v904
    %v1084 = vunpack.c.h.b16 %v904
    %v1085 = vunpack.c.l.b16 %v905
    %v1086 = vunpack.c.h.b16 %v905
    %v1087 = vunpack.c.l.b16 %v906
    %v1088 = vunpack.c.h.b16 %v906
    %v1089 = vunpack.c.l.b16 %v907
    %v1090 = vunpack.c.h.b16 %v907
    %v1091 = vunpack.c.l.b16 %v908
    %v1092 = vunpack.c.h.b16 %v908
    %v1093 = vunpack.c.l.b16 %v909
    %v1094 = vunpack.c.h.b16 %v909
    %v1095 = vunpack.c.l.b16 %v910
    %v1096 = vunpack.c.h.b16 %v910
    %v1097 = vunpack.c.l.b16 %v911
    %v1098 = vunpack.c.h.b16 %v911
    %v1099 = vunpack.c.l.b16 %v912
    %v1100 = vunpack.c.h.b16 %v912
    %v1101 = vunpack.c.l.b16 %v913
    %v1102 = vunpack.c.h.b16 %v913
    %v1103 = vunpack.c.l.b16 %v914
    %v1104 = vunpack.c.h.b16 %v914
    %v1105 = vunpack.c.l.b16 %v915
    %v1106 = vunpack.c.h.b16 %v915
    %v1107 = vunpack.c.l.b16 %v916
    %v1108 = vunpack.c.h.b16 %v916
    %v1109 = vunpack.c.l.b16 %v917
    %v1110 = vunpack.c.h.b16 %v917
    %v1111 = vunpack.c.l.b16 %v918
    %v1112 = vunpack.c.h.b16 %v918
    %v1113 = vunpack.c.l.b16 %v919
    %v1114 = vunpack.c.h.b16 %v919
    %v1115 = vunpack.c.l.b16 %v920
    %v1116 = vunpack.c.h.b16 %v920
    %v1117 = vunpack.c.l.b16 %v921
    %v1118 = vunpack.c.h.b16 %v921
    %v1119 = vunpack.c.l.b16 %v922
    %v1120 = vunpack.c.h.b16 %v922
    %v1121 = vunpack.c.l.b16 %v923
    %v1122 = vunpack.c.h.b16 %v923
    %v1123 = vunpack.c.l.b16 %v924
    %v1124 = vunpack.c.h.b16 %v924
    %v1125 = vunpack.c.l.b16 %v925
    %v1126 = vunpack.c.h.b16 %v925
    %v1127 = vunpack.c.l.b16 %v926
    %v1128 = vunpack.c.h.b16 %v926
    %v1129 = vunpack.c.l.b16 %v927
    %v1130 = vunpack.c.h.b16 %v927
    %v1131 = vunpack.c.l.b16 %v928
    %v1132 = vunpack.c.h.b16 %v928
    %v1133 = vpack.c.b16 %v1007, %v1005
    %v1134 = vpack.c.b16 %v1008, %v1006
    %v1135 = vpack.c.b16 %v1011, %v1009
    %v1136 = vpack.c.b16 %v1012, %v1010
    %v1137 = vpack.c.b16 %v1015, %v1013
    %v1138 = vpack.c.b16 %v1016, %v1014
    %v1139 = vpack.c.b16 %v1019, %v1017
    %v1140 = vpack.c.b16 %v1020, %v1018
    %v1141 = vpack.c.b16 %v1023, %v1021
    %v1142 = vpack.c.b16 %v1024, %v1022
    %v1143 = vpack.c.b16 %v1027, %v1025
    %v1144 = vpack.c.b16 %v1028, %v1026
    %v1145 = vpack.c.b16 %v1031, %v1029
    %v1146 = vpack.c.b16 %v1032, %v1030
    %v1147 = vpack.c.b16 %v1035, %v1033
    %v1148 = vpack.c.b16 %v1036, %v1034
    %v1149 = vpack.c.b16 %v1039, %v1037
    %v1150 = vpack.c.b16 %v1040, %v1038
    %v1151 = vpack.c.b16 %v1043, %v1041
    %v1152 = vpack.c.b16 %v1044, %v1042
    %v1153 = vpack.c.b16 %v1047, %v1045
    %v1154 = vpack.c.b16 %v1048, %v1046
    %v1155 = vpack.c.b16 %v1051, %v1049
    %v1156 = vpack.c.b16 %v1052, %v1050
    %v1157 = vpack.c.b16 %v1055, %v1053
    %v1158 = vpack.c.b16 %v1056, %v1054
    %v1159 = vpack.c.b16 %v1059, %v1057
    %v1160 = vpack.c.b16 %v1060, %v1058
    %v1161 = vpack.c.b16 %v1063, %v1061
    %v1162 = vpack.c.b16 %v1064, %v1062
    %v1163 = vpack.c.b16 %v1067, %v1065
    %v1164 = vpack.c.b16 %v1068, %v1066
    %v1165 = vpack.c.b16 %v1071, %v1069
    %v1166 = vpack.c.b16 %v1072, %v1070
    %v1167 = vpack.c.b16 %v1075, %v1073
    %v1168 = vpack.c.b16 %v1076, %v1074
    %v1169 = vpack.c.b16 %v1079, %v1077
    %v1170 = vpack.c.b16 %v1080, %v1078
    %v1171 = vpack.c.b16 %v1083, %v1081
    %v1172 = vpack.c.b16 %v1084, %v1082
    %v1173 = vpack.c.b16 %v1087, %v1085
    %v1174 = vpack.c.b16 %v1088, %v1086
    %v1175 = vpack.c.b16 %v1091, %v1089
    %v1176 = vpack.c.b16 %v1092, %v1090
    %v1177 = vpack.c.b16 %v1095, %v1093
    %v1178 = vpack.c.b16 %v1096, %v1094
    %v1179 = vpack.c.b16 %v1099, %v1097
    %v1180 = vpack.c.b16 %v1100, %v1098
    %v1181 = vpack.c.b16 %v1103, %v1101
    %v1182 = vpack.c.b16 %v1104, %v1102
    %v1183 = vpack.c.b16 %v1107, %v1105
    %v1184 = vpack.c.b16 %v1108, %v1106
    %v1185 = vpack.c.b16 %v1111, %v1109
    %v1186 = vpack.c.b16 %v1112, %v1110
    %v1187 = vpack.c.b16 %v1115, %v1113
    %v1188 = vpack.c.b16 %v1116, %v1114
    %v1189 = vpack.c.b16 %v1119, %v1117
    %v1190 = vpack.c.b16 %v1120, %v1118
    %v1191 = vpack.c.b16 %v1123, %v1121
    %v1192 = vpack.c.b16 %v1124, %v1122
    %v1193 = vpack.c.b16 %v1127, %v1125
    %v1194 = vpack.c.b16 %v1128, %v1126
    %v1195 = vpack.c.b16 %v1131, %v1129
    %v1196 = vpack.c.b16 %v1132, %v1130
    %1261 = vmatprep.subr.bf16.mxu0 %v1134
    %1262 = vmatpush1.bf16.msra.mxu0 %v1133
    %1263 = vmatprep.subr.bf16.mxu0 %v1136
    %1264 = vmatpush1.bf16.msra.mxu0 %v1135
    %1265 = vmatprep.subr.bf16.mxu0 %v1138
    %1266 = vmatpush1.bf16.msra.mxu0 %v1137
    %1267 = vmatprep.subr.bf16.mxu0 %v1140
    %1268 = vmatpush1.bf16.msra.mxu0 %v1139
    %1269 = vmatprep.subr.bf16.mxu0 %v1142
    %1270 = vmatpush1.bf16.msra.mxu0 %v1141
    %1271 = vmatprep.subr.bf16.mxu0 %v1144
    %1272 = vmatpush1.bf16.msra.mxu0 %v1143
    %1273 = vmatprep.subr.bf16.mxu0 %v1146
    %1274 = vmatpush1.bf16.msra.mxu0 %v1145
    %1275 = vmatprep.subr.bf16.mxu0 %v1148
    %1276 = vmatpush1.bf16.msra.mxu0 %v1147
    %1277 = vmatprep.subr.bf16.mxu0 %v1150
    %1278 = vmatpush1.bf16.msra.mxu0 %v1149
    %1279 = vmatprep.subr.bf16.mxu0 %v1152
    %1280 = vmatpush1.bf16.msra.mxu0 %v1151
    %1281 = vmatprep.subr.bf16.mxu0 %v1154
    %1282 = vmatpush1.bf16.msra.mxu0 %v1153
    %1283 = vmatprep.subr.bf16.mxu0 %v1156
    %1284 = vmatpush1.bf16.msra.mxu0 %v1155
    %1285 = vmatprep.subr.bf16.mxu0 %v1158
    %1286 = vmatpush1.bf16.msra.mxu0 %v1157
    %1287 = vmatprep.subr.bf16.mxu0 %v1160
    %1288 = vmatpush1.bf16.msra.mxu0 %v1159
    %1289 = vmatprep.subr.bf16.mxu0 %v1162
    %1290 = vmatpush1.bf16.msra.mxu0 %v1161
    %1291 = vmatprep.subr.bf16.mxu0 %v1164
    %1292 = vmatpush1.bf16.msra.mxu0 %v1163
    %1293 = vmatprep.mubr.bf16.mxu0 %v862
    %1294 = vmatmul.mubr.bf16.gmra.mrb[0].mxu0 %v861
    %v1295 = vpop.f32.mrb[0].mxu0
    %v1296 = vadd.f32 %v934, %v1295
    %v1297 = vpop.f32.mrb[0].mxu0
    %v1298 = vadd.f32 %v938, %v1297
    %v1299 = vpop.f32.mrb[0].mxu0
    %v1300 = vadd.f32 %v934, %v1299
    %v1301 = vpop.f32.mrb[0].mxu0
    %v1302 = vadd.f32 %v938, %v1301
    %1303 = vdwg.mxu0
    %1304 = vmatprep.subr.bf16.mxu0 %v1166
    %1305 = vmatpush1.bf16.msra.mxu0 %v1165
    %1306 = vmatprep.subr.bf16.mxu0 %v1168
    %1307 = vmatpush1.bf16.msra.mxu0 %v1167
    %1308 = vmatprep.subr.bf16.mxu0 %v1170
    %1309 = vmatpush1.bf16.msra.mxu0 %v1169
    %1310 = vmatprep.subr.bf16.mxu0 %v1172
    %1311 = vmatpush1.bf16.msra.mxu0 %v1171
    %1312 = vmatprep.subr.bf16.mxu0 %v1174
    %1313 = vmatpush1.bf16.msra.mxu0 %v1173
    %1314 = vmatprep.subr.bf16.mxu0 %v1176
    %1315 = vmatpush1.bf16.msra.mxu0 %v1175
    %1316 = vmatprep.subr.bf16.mxu0 %v1178
    %1317 = vmatpush1.bf16.msra.mxu0 %v1177
    %1318 = vmatprep.subr.bf16.mxu0 %v1180
    %1319 = vmatpush1.bf16.msra.mxu0 %v1179
    %1320 = vmatprep.subr.bf16.mxu0 %v1182
    %1321 = vmatpush1.bf16.msra.mxu0 %v1181
    %1322 = vmatprep.subr.bf16.mxu0 %v1184
    %1323 = vmatpush1.bf16.msra.mxu0 %v1183
    %1324 = vmatprep.subr.bf16.mxu0 %v1186
    %1325 = vmatpush1.bf16.msra.mxu0 %v1185
    %1326 = vmatprep.subr.bf16.mxu0 %v1188
    %1327 = vmatpush1.bf16.msra.mxu0 %v1187
    %1328 = vmatprep.subr.bf16.mxu0 %v1190
    %1329 = vmatpush1.bf16.msra.mxu0 %v1189
    %1330 = vmatprep.subr.bf16.mxu0 %v1192
    %1331 = vmatpush1.bf16.msra.mxu0 %v1191
    %1332 = vmatprep.subr.bf16.mxu0 %v1194
    %1333 = vmatpush1.bf16.msra.mxu0 %v1193
    %1334 = vmatprep.subr.bf16.mxu0 %v1196
    %1335 = vmatpush1.bf16.msra.mxu0 %v1195
    %1336 = vmatprep.mubr.bf16.mxu0 %v864
    %1337 = vmatmul.mubr.bf16.gmra.mrb[0].mxu0 %v863
    %v1338 = vpop.f32.mrb[0].mxu0
    %v1339 = vadd.f32 %v1296, %v1338
    %v1340 = vpop.f32.mrb[0].mxu0
    %v1341 = vadd.f32 %v1298, %v1340
    %v1342 = vpop.f32.mrb[0].mxu0
    %v1343 = vadd.f32 %v1300, %v1342
    %v1344 = vpop.f32.mrb[0].mxu0
    %v1345 = vadd.f32 %v1302, %v1344
    %1346 = vdwg.mxu0
    %v1347 = vtanh.pop %v1339
    %v1348 = vtanh.pop %v1341
    %v1349 = vtanh.pop %v1343
    %v1350 = vtanh.pop %v1345
    %1351 = vst [vmem:[#allocation11] sm:$0xff] %v1347
    %1352 = vst [vmem:[#allocation11 + $0x8] sm:$0xff] %v1348
    %1353 = vst [vmem:[#allocation11 + $0x10] sm:$0xff] %v1349
    %1354 = vst [vmem:[#allocation11 + $0x18] sm:$0xff] %v1350
    // Predicated region
    $region58: #{tpu_custom_call.1} parent=1 // pred_check
      _
    $region59: #{tpu_custom_call.1} parent=1 // pred_check_branch
      %1356 = sbr.rel (0) target = $region61
    $region60: #{tpu_custom_call.1} parent=1 // pred_region
      %s1358 = ssub.s32 512, 256
      %1359 = vsyncadd [#allocation4], %s1358
      %s1360 = sshll.u32 [#allocation11], 4
      %s1361 = int_to_ptr.vmem [resolvable:$true] %s1360
      %1366 = dma.vmem_to_hbm [thread:$0]  %s1361, 256, %s9, [#allocation4], 256, 256, 16
    $region61: #{tpu_custom_call.1} parent=1 // pred_fallthru
      _
    // Predicated region
    $region62: #{tpu_custom_call.1} parent=1 // pred_check
      _
    $region63: #{tpu_custom_call.1} parent=1 // pred_check_branch
      %1368 = sbr.rel (0) target = $region65
    $region64: #{tpu_custom_call.1} parent=1 // pred_region
      %1369 = dma.done [#allocation4], 512
    $region65: #{tpu_custom_call.1} parent=1 // pred_fallthru
      _
    %1370 = vsyncpa [#allocation3], 1
    %1371 = vsyncpa [#allocation6], 1
    %1372 = vsyncpa [#allocation9], 1
    %1373 = vsyncpa [#allocation4], 1

</llo_original>
